<compile_context>
chip_gen: v5e
topology: v5e:2x2
jax: 0.10.0
libtpu: 0.0.40
codegen_flags: <defaults>
</compile_context>

<pallas_src>
import numpy as np
import jax
import jax.numpy as jnp
from jax.experimental import pallas as pl
from jax.experimental.pallas import tpu as pltpu

HWP = 128          # spatial positions padded to one full lane tile per batch element
BSLAB_COLS = 8     # bias-slab lane width (5 bias columns used)


def _conv3x3_shift_basis(H, W):
    """E[di+1, dj+1, m, n] = 1 iff flat input position m == (i+di)*W + (j+dj) feeds flat
    output position n == i*W + j under tap (di, dj) of a 3x3 / pad=1 convolution."""
    HW = H * W
    E = np.zeros((3, 3, HW, HW), np.float32)
    for di in (-1, 0, 1):
        for dj in (-1, 0, 1):
            for i in range(H):
                for j in range(W):
                    ii, jj = i + di, j + dj
                    if 0 <= ii < H and 0 <= jj < W:
                        E[di + 1, dj + 1, ii * W + jj, i * W + j] = 1.0
    return E


def _fold_spatial_conv(ws, H, W):
    """Fold the CBAM 3x3/pad=1 spatial-attention conv (2->1, bias-free) into a
    (2*HWP, HWP) operator slab: rows [0:HW] act on the channel-mean map,
    rows [HWP:HWP+HW] act on the channel-max map.  Padded rows/cols are zero."""
    HW = H * W
    E = _conv3x3_shift_basis(H, W)                                    # (3,3,HW,HW)
    s = np.einsum("ckl,klmn->cmn", np.asarray(ws, np.float32), E)     # (2,HW,HW)
    slab = np.zeros((2 * HWP, HWP), np.float32)
    slab[0:HW, 0:HW] = s[0]
    slab[HWP:HWP + HW, 0:HW] = s[1]
    return slab


def _slab_layout(C, NC):
    """Row offsets of every matmul weight inside the single packed bf16 slab.
    Starts are 16-aligned so each bf16 slice begins on a packed sublane tile."""
    def up16(n):
        return ((n + 15) // 16) * 16
    sizes = {
        "w1":  (C, 2 * C),       # Fusion conv1 (1x1, 2C->C), acts on stacked [x1; x2]
        "w2":  (C, C),           # Fusion conv2 (1x1, C->C)
        "wc1": (C // 2, C),      # CBAM channel MLP, reduce
        "wc2": (C, C // 2),      # CBAM channel MLP, expand
        "wf1": (2 * C, C),       # Classifer FeedForward fc1
        "wf2": (C, 2 * C),       # Classifer FeedForward fc2
        "wfc": (NC, C),          # Classifer final fc
        "s":   (2 * HWP, HWP),   # folded 3x3 spatial-attention conv operators
    }
    offs, r = {}, 0
    for name, (nr, _) in sizes.items():
        offs[name] = r
        r = up16(r + nr)
    return offs, r, sizes


def pack_head_params(p, H, W):
    """One-time, weight-only preprocessing (outside the jitted forward): fold the 3x3
    spatial conv, pack all matmul weights into one bf16 slab and all biases into one
    small f32 slab."""
    C = p["w2"].shape[0]
    NC = p["wfc"].shape[0]
    assert NC <= 2 * C
    offs, R, sizes = _slab_layout(C, NC)
    mats = {"w1": p["w1"], "w2": p["w2"], "wc1": p["wc1"], "wc2": p["wc2"],
            "wf1": p["wf1"], "wf2": p["wf2"], "wfc": p["wfc"],
            "s": _fold_spatial_conv(p["ws"], H, W)}
    wslab = np.zeros((R, HWP), np.float32)
    for name, w in mats.items():
        w = np.asarray(w, np.float32)
        assert w.shape == sizes[name], (name, w.shape, sizes[name])
        wslab[offs[name]:offs[name] + w.shape[0], :w.shape[1]] = w
    bslab = np.zeros((2 * C, BSLAB_COLS), np.float32)
    bslab[:C, 0] = np.asarray(p["b1"])
    bslab[:C, 1] = np.asarray(p["b2"])
    bslab[:2 * C, 2] = np.asarray(p["bf1"])
    bslab[:C, 3] = np.asarray(p["bf2"])
    bslab[:NC, 4] = np.asarray(p["bfc"])
    return jnp.asarray(wslab, jnp.bfloat16), jnp.asarray(bslab, jnp.float32)


def make_head_forward(C, num_classes, H, W, b_blk):
    """Builds the jitted forward: (x1, x2, wslab, bslab) -> (B, num_classes) logits.

    Choose b_blk so that grid = ceil(B / b_blk) >= 2 (v7x has two TensorCores) and the
    per-step working set fits VMEM (trivial here: ~tens of KB per batch element, so even
    b_blk=128 is a few MB vs v7x's 32 MiB scoped / v5e-v6e's 128 MiB)."""
    assert (H, W) == (7, 7), "Classifer's MaxPool2d((7,7)) + Linear(d_model) implies 7x7 maps"
    assert C % 8 == 0, "channel count must be sublane-aligned"
    assert 1 <= b_blk <= HWP
    HW = H * W
    NC = num_classes
    O, R, _ = _slab_layout(C, NC)
    f32, bf16 = jnp.float32, jnp.bfloat16

    def kernel(x_ref, w_ref, b_ref, o_ref):
        # ---- carve packed weights (bf16) / biases (f32) with static slices -----------
        w1 = w_ref[O["w1"]:O["w1"] + C, 0:2 * C]
        w2 = w_ref[O["w2"]:O["w2"] + C, 0:C]
        wc1 = w_ref[O["wc1"]:O["wc1"] + C // 2, 0:C]
        wc2 = w_ref[O["wc2"]:O["wc2"] + C, 0:C // 2]
        wf1 = w_ref[O["wf1"]:O["wf1"] + 2 * C, 0:C]
        wf2 = w_ref[O["wf2"]:O["wf2"] + C, 0:2 * C]
        wfc = w_ref[O["wfc"]:O["wfc"] + NC, 0:C]
        sop = w_ref[O["s"]:O["s"] + 2 * HWP, 0:HWP]
        b1 = b_ref[0:C, 0:1]
        b2 = b_ref[0:C, 1:2]
        bf1 = b_ref[0:2 * C, 2:3]
        bf2 = b_ref[0:C, 3:4]
        bfc = b_ref[0:NC, 4:5]

        xcat = x_ref[...]                                   # (2C, b_blk*128) bf16

        # ---- Fusion gating: conv1([x1;x2]) -> ReLU -> conv2 -> tanh -> blend ---------
        h = jnp.dot(w1, xcat, preferred_element_type=f32) + b1
        h = jnp.maximum(h, 0.0)
        attn = jnp.tanh(jnp.dot(w2, h.astype(bf16), preferred_element_type=f32) + b2)
        xcat32 = xcat.astype(f32)
        fused = xcat32[0:C, :] * attn + xcat32[C:2 * C, :] * (1.0 - attn)   # (C, L) f32
        fused3 = fused.reshape(C, b_blk, HWP)               # lane-tile-aligned view
        valid = jax.lax.broadcasted_iota(jnp.int32, (C, b_blk, HWP), 2) < HW
        NEG = jnp.float32(-1e30)

        # ---- CBAM channel attention ([avg|max] stacked -> 2 matmuls, not 4) ----------
        avg = jnp.sum(fused3, axis=2) * jnp.float32(1.0 / HW)        # (C, b_blk)
        mxp = jnp.max(jnp.where(valid, fused3, NEG), axis=2)         # (C, b_blk)
        amx = jnp.concatenate([avg, mxp], axis=1).astype(bf16)       # (C, 2*b_blk)
        hc = jnp.maximum(jnp.dot(wc1, amx, preferred_element_type=f32), 0.0)
        cc = jnp.dot(wc2, hc.astype(bf16), preferred_element_type=f32)
        scale = jax.nn.sigmoid(cc[:, 0:b_blk] + cc[:, b_blk:2 * b_blk])     # (C, b_blk)
        xca3 = fused3 * scale[:, :, None]                             # (C, b_blk, 128)

        # ---- CBAM spatial attention: folded 3x3 conv as one (b_blk,256)@(256,128) ----
        cm = jnp.mean(xca3, axis=0)                                   # (b_blk, 128)
        cx = jnp.max(xca3, axis=0)                                    # (b_blk, 128)
        a = jnp.concatenate([cm, cx], axis=1).astype(bf16)            # (b_blk, 256)
        sattn = jax.nn.sigmoid(jnp.dot(a, sop, preferred_element_type=f32))  # (b_blk,128)
        xsa3 = xca3 * sattn[None, :, :]                               # (C, b_blk, 128)

        # ---- Classifer: MaxPool2d((7,7)) + FFN residual + ReLU + Linear --------------
        pooled = jnp.max(jnp.where(valid, xsa3, NEG), axis=2)         # (C, b_blk)
        hf = jnp.maximum(
            jnp.dot(wf1, pooled.astype(bf16), preferred_element_type=f32) + bf1, 0.0)
        ff = jnp.dot(wf2, hf.astype(bf16), preferred_element_type=f32) + bf2
        r = jnp.maximum(pooled + ff, 0.0)
        logits = jnp.dot(wfc, r.astype(bf16), preferred_element_type=f32) + bfc  # (NC,b_blk)

        # ---- lane-dense output slab: (NC, 128) with logits in the first b_blk lanes --
        if b_blk < HWP:
            logits = jnp.concatenate(
                [logits, jnp.zeros((NC, HWP - b_blk), f32)], axis=1)
        o_ref[...] = logits

    def forward(x1, x2, wslab, bslab):
        assert wslab.shape == (R, HWP) and wslab.dtype == jnp.bfloat16
        assert bslab.shape == (2 * C, BSLAB_COLS)
        B = x1.shape[0]
        G = pl.cdiv(B, b_blk)
        Bp = G * b_blk

        def prep(x):     # NCHW -> (Bp, C, 128): lane-pad spatial, zero-pad batch
            x = x.reshape(B, C, HW)
            return jnp.pad(x, ((0, Bp - B), (0, 0), (0, HWP - HW)))

        xc = jnp.concatenate([prep(x1), prep(x2)], axis=1)            # (Bp, 2C, 128)
        xc = jnp.transpose(xc, (1, 0, 2)).reshape(2 * C, Bp * HWP)    # channels major
        xc = xc.astype(bf16)

        flops = Bp * (2 * HWP * (2 * C * C + C * C) + 8 * C * (C // 2)
                      + 4 * HWP * HWP + 2 * (4 * C * C + NC * C) + 16 * C * HWP)
        transcendentals = Bp * (C * HWP + C + HWP)
        bytes_accessed = (xc.size * 2 + R * HWP * 2 + 2 * C * BSLAB_COLS * 4
                          + G * NC * HWP * 4)

        out = pl.pallas_call(
            kernel,
            out_shape=jax.ShapeDtypeStruct((G, NC, HWP), jnp.float32),
            grid=(G,),
            in_specs=[
                pl.BlockSpec((2 * C, b_blk * HWP), lambda i: (0, i)),
                pl.BlockSpec((R, HWP), lambda i: (0, 0)),
                pl.BlockSpec((2 * C, BSLAB_COLS), lambda i: (0, 0)),
            ],
            out_specs=pl.BlockSpec((None, NC, HWP), lambda i: (i, 0, 0)),
            compiler_params=pltpu.CompilerParams(dimension_semantics=("parallel",)),
            cost_estimate=pl.CostEstimate(flops=flops,
                                          transcendentals=transcendentals,
                                          bytes_accessed=bytes_accessed),
        )(xc, wslab, bslab)

        logits = jnp.transpose(out[:, :, :b_blk], (0, 2, 1)).reshape(Bp, NC)
        return logits[:B]

    return jax.jit(forward)


# ---------------------------------------------------------------------------
# Pure-JAX f32 reference (native weight layouts, explicit 3x3 conv) for verification
# ---------------------------------------------------------------------------
def head_reference(x1, x2, p):
    hp = jax.lax.Precision.HIGHEST
    B, C, H, W = x1.shape
    HW = H * W
    x1f = x1.reshape(B, C, HW)
    x2f = x2.reshape(B, C, HW)
    xcat = jnp.concatenate([x1f, x2f], axis=1)

    # Fusion gating
    h = jax.nn.relu(jnp.einsum("oc,bcn->bon", p["w1"], xcat, precision=hp)
                    + p["b1"][None, :, None])
    attn = jnp.tanh(jnp.einsum("oc,bcn->bon", p["w2"], h, precision=hp)
                    + p["b2"][None, :, None])
    fused = x1f * attn + x2f * (1.0 - attn)

    # CBAM channel attention
    avg = jnp.mean(fused, axis=2)
    mxp = jnp.max(fused, axis=2)

    def mlp(v):
        hh = jax.nn.relu(jnp.einsum("rc,bc->br", p["wc1"], v, precision=hp))
        return jnp.einsum("cr,br->bc", p["wc2"], hh, precision=hp)

    scale = jax.nn.sigmoid(mlp(avg) + mlp(mxp))
    xca = fused * scale[:, :, None]

    # CBAM spatial attention: explicit 3x3 / pad=1 conv on (mean, max) channel maps
    cm = jnp.mean(xca, axis=1).reshape(B, H, W)
    cx = jnp.max(xca, axis=1).reshape(B, H, W)
    sp = jnp.stack([cm, cx], axis=1)
    spp = jnp.pad(sp, ((0, 0), (0, 0), (1, 1), (1, 1)))
    conv = jnp.zeros((B, H, W), jnp.float32)
    for di in range(3):
        for dj in range(3):
            conv = conv + jnp.einsum("k,bkhw->bhw", p["ws"][:, di, dj],
                                     spp[:, :, di:di + H, dj:dj + W], precision=hp)
    sattn = jax.nn.sigmoid(conv.reshape(B, 1, HW))
    x_sa = xca * sattn

    # Classifer
    pooled = jnp.max(x_sa, axis=2)
    hf = jax.nn.relu(jnp.einsum("oc,bc->bo", p["wf1"], pooled, precision=hp)
                     + p["bf1"][None])
    ff = jnp.einsum("oc,bc->bo", p["wf2"], hf, precision=hp) + p["bf2"][None]
    r = jax.nn.relu(pooled + ff)
    return jnp.einsum("oc,bc->bo", p["wfc"], r, precision=hp) + p["bfc"][None]


# ---------------------------------------------------------------------------
# Main
# ---------------------------------------------------------------------------
if __name__ == "__main__":
    B, C, H, W = 8, 8, 7, 7       # d_model = 8, spatial 7x7 (required by the Classifer head)
    NUM_CLASSES = 4
    B_BLK = 4                     # grid = B/B_BLK = 2 steps -> both v7x TensorCores get work

    key = jax.random.PRNGKey(0)
    keys = jax.random.split(key, 16)

    def init(k, shape, scale=0.2):
        return jax.random.normal(k, shape, dtype=jnp.float32) * scale

    # Weights in native PyTorch (out_features, in_features) layout; biases as 1-D vectors.
    params = {
        "w1":  init(keys[0], (C, 2 * C)),      # Fusion conv1 (1x1), acts on cat(x1, x2)
        "b1":  init(keys[1], (C,)),
        "w2":  init(keys[2], (C, C)),          # Fusion conv2 (1x1)
        "b2":  init(keys[3], (C,)),
        "wc1": init(keys[4], (C // 2, C)),     # CBAM channel MLP (reduction=2, bias-free)
        "wc2": init(keys[5], (C, C // 2)),
        "ws":  init(keys[6], (2, 3, 3)),       # CBAM spatial 3x3 conv (2->1, pad=1, bias-free)
        "wf1": init(keys[7], (2 * C, C)),      # Classifer FeedForward fc1
        "bf1": init(keys[8], (2 * C,)),
        "wf2": init(keys[9], (C, 2 * C)),      # Classifer FeedForward fc2
        "bf2": init(keys[10], (C,)),
        "wfc": init(keys[11], (NUM_CLASSES, C)),
        "bfc": init(keys[12], (NUM_CLASSES,)),
    }

    x1 = jax.random.normal(keys[13], (B, C, H, W), dtype=jnp.float32)
    x2 = jax.random.normal(keys[14], (B, C, H, W), dtype=jnp.float32)

    # One-time, weight-only preprocessing (hoisted out of the jitted forward).
    wslab, bslab = pack_head_params(params, H, W)
    fwd = make_head_forward(C, NUM_CLASSES, H, W, B_BLK)

    out = jax.block_until_ready(fwd(x1, x2, wslab, bslab))
    ref = head_reference(x1, x2, params)

    assert out.shape == (B, NUM_CLASSES), out.shape
    # Kernel uses bf16 MXU operands (f32 accumulation); reference is f32 HIGHEST precision,
    # so the tolerance is set to cover bf16 operand rounding across ~6 matmul stages.
    assert jnp.allclose(out, ref, rtol=3e-2, atol=3e-2), (out, ref)

    print("KERNEL_OK")
</pallas_src>

<mosaic_0001>
module attributes {stable_mosaic.version = 11 : i64} {
  func.func @kernel(%arg0: i32, %arg1: memref<16x512xbf16, #tpu.memory_space<vmem>>, %arg2: memref<368x128xbf16, #tpu.memory_space<vmem>>, %arg3: memref<16x8xf32, #tpu.memory_space<vmem>>, %arg4: memref<1x4x128xf32, #tpu.memory_space<vmem>>) attributes {dimension_semantics = [#tpu.dimension_semantics<parallel>], iteration_bounds = array<i64: 2>, scalar_prefetch = 0 : i64, scratch_operands = 0 : i64, tpu.core_type = #tpu.core_type<tc>, window_params = [{transform_indices = @transform_0, window_bounds = array<i64: 16, 512>}, {pipeline_mode = #tpu.pipeline_mode<synchronous>, transform_indices = @transform_1, window_bounds = array<i64: 368, 128>}, {pipeline_mode = #tpu.pipeline_mode<synchronous>, transform_indices = @transform_2, window_bounds = array<i64: 16, 8>}, {transform_indices = @transform_3, window_bounds = array<i64: 1, 4, 128>}]} {
    %c0 = arith.constant 0 : index
    %c0_0 = arith.constant 0 : index
    %0 = vector.load %arg2[%c0, %c0_0] : memref<368x128xbf16, #tpu.memory_space<vmem>>, vector<8x16xbf16>
    %c16 = arith.constant 16 : index
    %c0_1 = arith.constant 0 : index
    %1 = vector.load %arg2[%c16, %c0_1] : memref<368x128xbf16, #tpu.memory_space<vmem>>, vector<8x8xbf16>
    %c32 = arith.constant 32 : index
    %c0_2 = arith.constant 0 : index
    %2 = vector.load %arg2[%c32, %c0_2] : memref<368x128xbf16, #tpu.memory_space<vmem>>, vector<4x8xbf16>
    %c48 = arith.constant 48 : index
    %c0_3 = arith.constant 0 : index
    %3 = vector.load %arg2[%c48, %c0_3] : memref<368x128xbf16, #tpu.memory_space<vmem>>, vector<8x4xbf16>
    %c64 = arith.constant 64 : index
    %c0_4 = arith.constant 0 : index
    %4 = vector.load %arg2[%c64, %c0_4] : memref<368x128xbf16, #tpu.memory_space<vmem>>, vector<16x8xbf16>
    %c80 = arith.constant 80 : index
    %c0_5 = arith.constant 0 : index
    %5 = vector.load %arg2[%c80, %c0_5] : memref<368x128xbf16, #tpu.memory_space<vmem>>, vector<8x16xbf16>
    %c96 = arith.constant 96 : index
    %c0_6 = arith.constant 0 : index
    %6 = vector.load %arg2[%c96, %c0_6] : memref<368x128xbf16, #tpu.memory_space<vmem>>, vector<4x8xbf16>
    %c112 = arith.constant 112 : index
    %c0_7 = arith.constant 0 : index
    %7 = vector.load %arg2[%c112, %c0_7] : memref<368x128xbf16, #tpu.memory_space<vmem>>, vector<256x128xbf16>
    %c0_8 = arith.constant 0 : index
    %c0_9 = arith.constant 0 : index
    %8 = vector.load %arg3[%c0_8, %c0_9] : memref<16x8xf32, #tpu.memory_space<vmem>>, vector<8x1xf32>
    %c0_10 = arith.constant 0 : index
    %c1 = arith.constant 1 : index
    %9 = vector.load %arg3[%c0_10, %c1] : memref<16x8xf32, #tpu.memory_space<vmem>>, vector<8x1xf32>
    %c0_11 = arith.constant 0 : index
    %c2 = arith.constant 2 : index
    %10 = vector.load %arg3[%c0_11, %c2] : memref<16x8xf32, #tpu.memory_space<vmem>>, vector<16x1xf32>
    %c0_12 = arith.constant 0 : index
    %c3 = arith.constant 3 : index
    %11 = vector.load %arg3[%c0_12, %c3] : memref<16x8xf32, #tpu.memory_space<vmem>>, vector<8x1xf32>
    %c0_13 = arith.constant 0 : index
    %c4 = arith.constant 4 : index
    %12 = vector.load %arg3[%c0_13, %c4] : memref<16x8xf32, #tpu.memory_space<vmem>>, vector<4x1xf32>
    %c0_14 = arith.constant 0 : index
    %c0_15 = arith.constant 0 : index
    %13 = vector.load %arg1[%c0_14, %c0_15] : memref<16x512xbf16, #tpu.memory_space<vmem>>, vector<16x512xbf16>
    %cst = arith.constant dense<0.000000e+00> : vector<8x512xf32>
    %14 = tpu.matmul %0, %13, %cst {dimension_numbers = #tpu.dot_dimension_numbers<[1], [0], [0], [1], [0, 0, 1, 1], [], []>} : vector<8x16xbf16>, vector<16x512xbf16>, vector<8x512xf32> -> vector<8x512xf32>
    %15 = vector.broadcast %8 : vector<8x1xf32> to vector<8x512xf32>
    %16 = arith.addf %14, %15 : vector<8x512xf32>
    %cst_16 = arith.constant 0.000000e+00 : f32
    %17 = vector.broadcast %cst_16 : f32 to vector<8x512xf32>
    %18 = arith.maximumf %16, %17 : vector<8x512xf32>
    %19 = arith.truncf %18 : vector<8x512xf32> to vector<8x512xbf16>
    %cst_17 = arith.constant dense<0.000000e+00> : vector<8x512xf32>
    %20 = tpu.matmul %1, %19, %cst_17 {dimension_numbers = #tpu.dot_dimension_numbers<[1], [0], [0], [1], [0, 0, 1, 1], [], []>} : vector<8x8xbf16>, vector<8x512xbf16>, vector<8x512xf32> -> vector<8x512xf32>
    %21 = vector.broadcast %9 : vector<8x1xf32> to vector<8x512xf32>
    %22 = arith.addf %20, %21 : vector<8x512xf32>
    %23 = math.tanh %22 : vector<8x512xf32>
    %24 = arith.extf %13 : vector<16x512xbf16> to vector<16x512xf32>
    %25 = vector.extract_strided_slice %24 {offsets = [0, 0], sizes = [8, 512], strides = [1, 1]} : vector<16x512xf32> to vector<8x512xf32>
    %26 = arith.mulf %25, %23 : vector<8x512xf32>
    %27 = vector.extract_strided_slice %24 {offsets = [8, 0], sizes = [8, 512], strides = [1, 1]} : vector<16x512xf32> to vector<8x512xf32>
    %cst_18 = arith.constant 1.000000e+00 : f32
    %28 = vector.broadcast %cst_18 : f32 to vector<8x512xf32>
    %29 = arith.subf %28, %23 : vector<8x512xf32>
    %30 = arith.mulf %27, %29 : vector<8x512xf32>
    %31 = arith.addf %26, %30 : vector<8x512xf32>
    %32 = vector.shape_cast %31 : vector<8x512xf32> to vector<8x4x128xf32>
    %33 = tpu.iota {dimensions = array<i32: 2>} : vector<8x4x128xi32>
    %c49_i32 = arith.constant 49 : i32
    %34 = vector.broadcast %c49_i32 : i32 to vector<8x4x128xi32>
    %35 = arith.cmpi slt, %33, %34 : vector<8x4x128xi32>
    %cst_19 = arith.constant dense<0.000000e+00> : vector<8x4xf32>
    %36 = vector.multi_reduction <add>, %32, %cst_19 [2] : vector<8x4x128xf32> to vector<8x4xf32>
    %cst_20 = arith.constant 0.0204081628 : f32
    %37 = vector.broadcast %cst_20 : f32 to vector<8x4xf32>
    %38 = arith.mulf %36, %37 : vector<8x4xf32>
    %cst_21 = arith.constant -1.000000e+30 : f32
    %39 = vector.broadcast %cst_21 : f32 to vector<8x4x128xf32>
    %40 = arith.select %35, %32, %39 : vector<8x4x128xi1>, vector<8x4x128xf32>
    %cst_22 = arith.constant dense<0xFF800000> : vector<8x4xf32>
    %41 = vector.multi_reduction <maximumf>, %40, %cst_22 [2] : vector<8x4x128xf32> to vector<8x4xf32>
    %42 = tpu.concatenate %38, %41 in 1 : vector<8x4xf32>, vector<8x4xf32> -> vector<8x8xf32>
    %43 = arith.truncf %42 : vector<8x8xf32> to vector<8x8xbf16>
    %cst_23 = arith.constant dense<0.000000e+00> : vector<4x8xf32>
    %44 = tpu.matmul %2, %43, %cst_23 {dimension_numbers = #tpu.dot_dimension_numbers<[1], [0], [0], [1], [0, 0, 1, 1], [], []>} : vector<4x8xbf16>, vector<8x8xbf16>, vector<4x8xf32> -> vector<4x8xf32>
    %cst_24 = arith.constant 0.000000e+00 : f32
    %45 = vector.broadcast %cst_24 : f32 to vector<4x8xf32>
    %46 = arith.maximumf %44, %45 : vector<4x8xf32>
    %47 = arith.truncf %46 : vector<4x8xf32> to vector<4x8xbf16>
    %cst_25 = arith.constant dense<0.000000e+00> : vector<8x8xf32>
    %48 = tpu.matmul %3, %47, %cst_25 {dimension_numbers = #tpu.dot_dimension_numbers<[1], [0], [0], [1], [0, 0, 1, 1], [], []>} : vector<8x4xbf16>, vector<4x8xbf16>, vector<8x8xf32> -> vector<8x8xf32>
    %49 = vector.extract_strided_slice %48 {offsets = [0, 0], sizes = [8, 4], strides = [1, 1]} : vector<8x8xf32> to vector<8x4xf32>
    %50 = vector.extract_strided_slice %48 {offsets = [0, 4], sizes = [8, 4], strides = [1, 1]} : vector<8x8xf32> to vector<8x4xf32>
    %51 = arith.addf %49, %50 : vector<8x4xf32>
    %52 = arith.negf %51 : vector<8x4xf32>
    %53 = math.exp %52 : vector<8x4xf32>
    %cst_26 = arith.constant 1.000000e+00 : f32
    %54 = vector.broadcast %cst_26 : f32 to vector<8x4xf32>
    %55 = arith.addf %54, %53 : vector<8x4xf32>
    %56 = arith.divf %54, %55 : vector<8x4xf32>
    %57 = vector.shape_cast %56 : vector<8x4xf32> to vector<8x4x1xf32>
    %58 = vector.broadcast %57 : vector<8x4x1xf32> to vector<8x4x128xf32>
    %59 = arith.mulf %32, %58 : vector<8x4x128xf32>
    %cst_27 = arith.constant dense<0.000000e+00> : vector<4x128xf32>
    %60 = vector.multi_reduction <add>, %59, %cst_27 [0] : vector<8x4x128xf32> to vector<4x128xf32>
    %cst_28 = arith.constant 8.000000e+00 : f32
    %61 = vector.broadcast %cst_28 : f32 to vector<4x128xf32>
    %62 = arith.divf %60, %61 : vector<4x128xf32>
    %cst_29 = arith.constant dense<0xFF800000> : vector<4x128xf32>
    %63 = vector.multi_reduction <maximumf>, %59, %cst_29 [0] : vector<8x4x128xf32> to vector<4x128xf32>
    %64 = tpu.concatenate %62, %63 in 1 : vector<4x128xf32>, vector<4x128xf32> -> vector<4x256xf32>
    %65 = arith.truncf %64 : vector<4x256xf32> to vector<4x256xbf16>
    %cst_30 = arith.constant dense<0.000000e+00> : vector<4x128xf32>
    %66 = tpu.matmul %65, %7, %cst_30 {dimension_numbers = #tpu.dot_dimension_numbers<[1], [0], [0], [1], [0, 0, 1, 1], [], []>} : vector<4x256xbf16>, vector<256x128xbf16>, vector<4x128xf32> -> vector<4x128xf32>
    %67 = arith.negf %66 : vector<4x128xf32>
    %68 = math.exp %67 : vector<4x128xf32>
    %cst_31 = arith.constant 1.000000e+00 : f32
    %69 = vector.broadcast %cst_31 : f32 to vector<4x128xf32>
    %70 = arith.addf %69, %68 : vector<4x128xf32>
    %71 = arith.divf %69, %70 : vector<4x128xf32>
    %72 = vector.shape_cast %71 : vector<4x128xf32> to vector<1x4x128xf32>
    %73 = vector.broadcast %72 : vector<1x4x128xf32> to vector<8x4x128xf32>
    %74 = arith.mulf %59, %73 : vector<8x4x128xf32>
    %cst_32 = arith.constant -1.000000e+30 : f32
    %75 = vector.broadcast %cst_32 : f32 to vector<8x4x128xf32>
    %76 = arith.select %35, %74, %75 : vector<8x4x128xi1>, vector<8x4x128xf32>
    %cst_33 = arith.constant dense<0xFF800000> : vector<8x4xf32>
    %77 = vector.multi_reduction <maximumf>, %76, %cst_33 [2] : vector<8x4x128xf32> to vector<8x4xf32>
    %78 = arith.truncf %77 : vector<8x4xf32> to vector<8x4xbf16>
    %cst_34 = arith.constant dense<0.000000e+00> : vector<16x4xf32>
    %79 = tpu.matmul %4, %78, %cst_34 {dimension_numbers = #tpu.dot_dimension_numbers<[1], [0], [0], [1], [0, 0, 1, 1], [], []>} : vector<16x8xbf16>, vector<8x4xbf16>, vector<16x4xf32> -> vector<16x4xf32>
    %80 = vector.broadcast %10 : vector<16x1xf32> to vector<16x4xf32>
    %81 = arith.addf %79, %80 : vector<16x4xf32>
    %cst_35 = arith.constant 0.000000e+00 : f32
    %82 = vector.broadcast %cst_35 : f32 to vector<16x4xf32>
    %83 = arith.maximumf %81, %82 : vector<16x4xf32>
    %84 = arith.truncf %83 : vector<16x4xf32> to vector<16x4xbf16>
    %cst_36 = arith.constant dense<0.000000e+00> : vector<8x4xf32>
    %85 = tpu.matmul %5, %84, %cst_36 {dimension_numbers = #tpu.dot_dimension_numbers<[1], [0], [0], [1], [0, 0, 1, 1], [], []>} : vector<8x16xbf16>, vector<16x4xbf16>, vector<8x4xf32> -> vector<8x4xf32>
    %86 = vector.broadcast %11 : vector<8x1xf32> to vector<8x4xf32>
    %87 = arith.addf %85, %86 : vector<8x4xf32>
    %88 = arith.addf %77, %87 : vector<8x4xf32>
    %cst_37 = arith.constant 0.000000e+00 : f32
    %89 = vector.broadcast %cst_37 : f32 to vector<8x4xf32>
    %90 = arith.maximumf %88, %89 : vector<8x4xf32>
    %91 = arith.truncf %90 : vector<8x4xf32> to vector<8x4xbf16>
    %cst_38 = arith.constant dense<0.000000e+00> : vector<4x4xf32>
    %92 = tpu.matmul %6, %91, %cst_38 {dimension_numbers = #tpu.dot_dimension_numbers<[1], [0], [0], [1], [0, 0, 1, 1], [], []>} : vector<4x8xbf16>, vector<8x4xbf16>, vector<4x4xf32> -> vector<4x4xf32>
    %93 = vector.broadcast %12 : vector<4x1xf32> to vector<4x4xf32>
    %94 = arith.addf %92, %93 : vector<4x4xf32>
    %cst_39 = arith.constant 0.000000e+00 : f32
    %95 = vector.broadcast %cst_39 : f32 to vector<4x124xf32>
    %96 = tpu.concatenate %94, %95 in 1 : vector<4x4xf32>, vector<4x124xf32> -> vector<4x128xf32>
    %c0_40 = arith.constant 0 : index
    %c0_41 = arith.constant 0 : index
    %c0_42 = arith.constant 0 : index
    %97 = vector.load %arg4[%c0_40, %c0_41, %c0_42] : memref<1x4x128xf32, #tpu.memory_space<vmem>>, vector<1x4x128xf32>
    %98 = vector.shape_cast %97 : vector<1x4x128xf32> to vector<4x128xf32>
    %99 = vector.shape_cast %96 : vector<4x128xf32> to vector<1x4x128xf32>
    tpu.vector_store %arg4[%c0_40, %c0_41, %c0_42], %99 {strides = array<i32>} : memref<1x4x128xf32, #tpu.memory_space<vmem>>, vector<1x4x128xf32>,
    return
  }
  func.func @transform_0(%arg0: i32) -> (i32, i32) {
    %c0_i32 = arith.constant 0 : i32
    %c0_i32_0 = arith.constant 0 : i32
    return %c0_i32, %arg0 : i32, i32
  }
  func.func @transform_1(%arg0: i32) -> (i32, i32) {
    %c0_i32 = arith.constant 0 : i32
    %c0_i32_0 = arith.constant 0 : i32
    %c0_i32_1 = arith.constant 0 : i32
    return %c0_i32, %c0_i32_0 : i32, i32
  }
  func.func @transform_2(%arg0: i32) -> (i32, i32) {
    %c0_i32 = arith.constant 0 : i32
    %c0_i32_0 = arith.constant 0 : i32
    %c0_i32_1 = arith.constant 0 : i32
    return %c0_i32, %c0_i32_0 : i32, i32
  }
  func.func @transform_3(%arg0: i32) -> (i32, i32, i32) {
    %c0_i32 = arith.constant 0 : i32
    %c0_i32_0 = arith.constant 0 : i32
    %c0_i32_1 = arith.constant 0 : i32
    return %arg0, %c0_i32, %c0_i32_0 : i32, i32, i32
  }
}

</mosaic_0001>

<llo_original>
// kernel: forward.1
$region0: #{forward.1}
  #allocation0 [shape = 'u32[]', space=smem, size = 0x4, offset = 0x4, fixed_abs, tag = 'smem constant byte address 0x4 - core index']
  #allocation1 [shape = 'u32[72,128]{1,0:T(1,128)}', space=vmem, size = 0x9000, scoped, tag = 'internal scratch']
  %s0 = inlined_call_operand.vmem [shape: bf16[16,1024], index: 0, kind: input, shape index: {}]
  %s1 = inlined_call_operand.vmem [shape: bf16[368,128], index: 1, kind: input, shape index: {}]
  %s2 = inlined_call_operand.vmem [shape: f32[16,8], index: 2, kind: input, shape index: {}]
  %s3 = inlined_call_operand.vmem [shape: f32[2,4,128], index: 3, kind: output, shape index: {}]
  %s4 = sld [smem:[#allocation0]]
  $region68: #{forward.1} parent=0
    _
  %s6 = ssub.s32 1, %s4
  %s7 = scalar_select 0, %s6, %s4
  $region1: #{forward.1} parent=0
    #allocation2 [shape = 'u8[32768]{0}', space=vmem, size = 0x8000, scoped, tag = 'input window, operand 0']
    loop: start=0, step=1, limit=4
    $region2: #{forward.1} parent=1 // loop_pre_header
      _
    $region3: #{forward.1} parent=1 // loop_header
      %s9 = sphi 0, %s13
      %p10 = scmp.ge.s32.totalorder %s9, 4
      %s19 = sphi 0, %s21
      %s22 = sphi 0, %s19
      %s23 = sphi 0, %s22
      %s39 = sphi 0, %s23
      %s43 = sphi 0, %s43
      %s45 = sphi 0, %s43
      %s46 = sphi 0, %s45
      %s60 = sphi 0, %s46
      %s64 = sphi 0, %s64
      %s66 = sphi 0, %s64
      %s67 = sphi 0, %s66
      %s81 = sphi 0, %s67
      %s87 = sphi 0, %s89
      %s90 = sphi 0, %s87
      %s91 = sphi 0, %s90
      %s107 = sphi 0, %s91
    $region4: #{forward.1} parent=1 // loop_header_branch
      %12 = sbr.rel (%p10) target = $region8
    $region5: #{forward.1} parent=1 // loop_body
      %s14 = ssub.s32 %s9, 1
      %s15 = ssub.s32 %s9, 2
      %s16 = sadd.s32 %s9, 1
      %s17 = ssub.s32 %s9, %s16
      %p18 = scmp.eq.s32.totalorder %s17, 0
      %s20 = sadd.s32 %s19, 1
      %s21 = scalar_select %p18, %s19, %s20
      %p24 = pneg %p18
      %p25 = scmp.eq.s32.totalorder %s9, 1
      %p26 = por %p24, %p25
      %p27 = scmp.ne.s32.totalorder %s19, %s22
      %p28 = scmp.eq.s32.totalorder %s9, 0
      %p29 = por %p27, %p28
      %p30 = scmp.ne.s32.totalorder %s19, %s22
      %p31 = scmp.eq.s32.totalorder %s14, 1
      %p32 = por %p30, %p31
      %p33 = scmp.ne.s32.totalorder %s22, %s23
      %p34 = scmp.eq.s32.totalorder %s14, 0
      %p35 = por %p33, %p34
      %p36 = scmp.ne.s32.totalorder %s22, %s23
      %p37 = scmp.eq.s32.totalorder %s15, 1
      %p38 = por %p36, %p37
      %p40 = scmp.ne.s32.totalorder %s23, %s39
      %p41 = scmp.eq.s32.totalorder %s15, 0
      %p42 = por %p40, %p41
      %s44 = sadd.s32 %s43, 1
      %p47 = scmp.eq.s32.totalorder %s9, 1
      %p48 = scmp.ne.s32.totalorder %s43, %s45
      %p49 = scmp.eq.s32.totalorder %s9, 0
      %p50 = por %p48, %p49
      %p51 = scmp.ne.s32.totalorder %s43, %s45
      %p52 = scmp.eq.s32.totalorder %s14, 1
      %p53 = por %p51, %p52
      %p54 = scmp.ne.s32.totalorder %s45, %s46
      %p55 = scmp.eq.s32.totalorder %s14, 0
      %p56 = por %p54, %p55
      %p57 = scmp.ne.s32.totalorder %s45, %s46
      %p58 = scmp.eq.s32.totalorder %s15, 1
      %p59 = por %p57, %p58
      %p61 = scmp.ne.s32.totalorder %s46, %s60
      %p62 = scmp.eq.s32.totalorder %s15, 0
      %p63 = por %p61, %p62
      %s65 = sadd.s32 %s64, 1
      %p68 = scmp.eq.s32.totalorder %s9, 1
      %p69 = scmp.ne.s32.totalorder %s64, %s66
      %p70 = scmp.eq.s32.totalorder %s9, 0
      %p71 = por %p69, %p70
      %p72 = scmp.ne.s32.totalorder %s64, %s66
      %p73 = scmp.eq.s32.totalorder %s14, 1
      %p74 = por %p72, %p73
      %p75 = scmp.ne.s32.totalorder %s66, %s67
      %p76 = scmp.eq.s32.totalorder %s14, 0
      %p77 = por %p75, %p76
      %p78 = scmp.ne.s32.totalorder %s66, %s67
      %p79 = scmp.eq.s32.totalorder %s15, 1
      %p80 = por %p78, %p79
      %p82 = scmp.ne.s32.totalorder %s67, %s81
      %p83 = scmp.eq.s32.totalorder %s15, 0
      %p84 = por %p82, %p83
      %s85 = ssub.s32 %s9, %s16
      %p86 = scmp.eq.s32.totalorder %s85, 0
      %s88 = sadd.s32 %s87, 1
      %s89 = scalar_select %p86, %s87, %s88
      %p92 = pneg %p86
      %p93 = scmp.eq.s32.totalorder %s9, 1
      %p94 = por %p92, %p93
      %p95 = scmp.ne.s32.totalorder %s87, %s90
      %p96 = scmp.eq.s32.totalorder %s9, 0
      %p97 = por %p95, %p96
      %p98 = scmp.ne.s32.totalorder %s87, %s90
      %p99 = scmp.eq.s32.totalorder %s14, 1
      %p100 = por %p98, %p99
      %p101 = scmp.ne.s32.totalorder %s90, %s91
      %p102 = scmp.eq.s32.totalorder %s14, 0
      %p103 = por %p101, %p102
      %p104 = scmp.ne.s32.totalorder %s90, %s91
      %p105 = scmp.eq.s32.totalorder %s15, 1
      %p106 = por %p104, %p105
      %p108 = scmp.ne.s32.totalorder %s91, %s107
      %p109 = scmp.eq.s32.totalorder %s15, 0
      %p110 = por %p108, %p109
      %p111 = scmp.le.s32.totalorder 1, %s9
      %p112 = scmp.lt.s32.totalorder %s9, 3
      %p113 = pnand %p111, %p112
      %p114 = pneg %p113
      // Predicated region
      $region9: #{forward.1} parent=5 // pred_check
        _
      $region10: #{forward.1} parent=5 // pred_check_branch
        %116 = sbr.rel (%p113) target = $region12
      $region11: #{forward.1} parent=5 // pred_region
        %s117 = ssub.s32 %s9, 1
        // Predicated region
        $region13: #{forward.1} parent=11 // pred_check
          %p118 = pneg %p56
        $region14: #{forward.1} parent=11 // pred_check_branch
          %120 = sbr.rel (%p118) target = $region16
        $region15: #{forward.1} parent=11 // pred_region
          _
        $region16: #{forward.1} parent=11 // pred_fallthru
          _
        // Predicated region
        $region17: #{forward.1} parent=11 // pred_check
          %p121 = pneg %p77
        $region18: #{forward.1} parent=11 // pred_check_branch
          %123 = sbr.rel (%p121) target = $region20
        $region19: #{forward.1} parent=11 // pred_region
          _
        $region20: #{forward.1} parent=11 // pred_fallthru
          _
      $region12: #{forward.1} parent=5 // pred_fallthru
        _
      %p124 = scmp.lt.s32.totalorder %s9, 2
      // Predicated region
      $region21: #{forward.1} parent=5 // pred_check
        %p125 = pneg %p124
      $region22: #{forward.1} parent=5 // pred_check_branch
        %127 = sbr.rel (%p125) target = $region24
      $region23: #{forward.1} parent=5 // pred_region
        // Predicated region
        $region25: #{forward.1} parent=23 // pred_check
          %p128 = pneg %p29
        $region26: #{forward.1} parent=23 // pred_check_branch
          %130 = sbr.rel (%p128) target = $region28
        $region27: #{forward.1} parent=23 // pred_region
          %s131 = sand.u32 %s19, 1
          %s132 = sand.u32 %s19, 1
          %s133 = smul.addr %s132, 32
          %s134 = scalar_lea.vmem [#allocation2], %s133
          %s135 = smul.u32 4, %s9
          %s136 = smul.addr %s135, 4
          %s137 = scalar_lea.vmem %s0, %s136
          // Predicated region
          $region29: #{forward.1} parent=27 // pred_check
            _
          $region30: #{forward.1} parent=27 // pred_check_branch
            %139 = sbr.rel (0) target = $region32
          $region31: #{forward.1} parent=27 // pred_region
            // Predicated region
            $region33: #{forward.1} parent=31 // pred_check
              _
            $region34: #{forward.1} parent=31 // pred_check_branch
              %141 = sbr.rel (0) target = $region36
            $region35: #{forward.1} parent=31 // pred_region
              loop: start=0, step=1, limit=1
              $region37: #{forward.1} parent=35 // loop_pre_header
                _
              $region38: #{forward.1} parent=35 // loop_header
                %s143 = sphi 0, %s147
                %p144 = scmp.ge.s32.totalorder %s143, 1
                %s148 = sphi %s137, %s137
                %s149 = sphi %s134, %s134
              $region39: #{forward.1} parent=35 // loop_header_branch
                %146 = sbr.rel (%p144) target = $region43
              $region40: #{forward.1} parent=35 // loop_body
                %v150 = vld [vmem:[%s148] sm:$0xff]
                %151 = vst [vmem:[%s149] sm:$0xff] %v150
                %v152 = vld [vmem:[%s148 + $0x8] sm:$0xff]
                %153 = vst [vmem:[%s149 + $0x8] sm:$0xff] %v152
                %v154 = vld [vmem:[%s148 + $0x20] sm:$0xff]
                %155 = vst [vmem:[%s149 + $0x10] sm:$0xff] %v154
                %v156 = vld [vmem:[%s148 + $0x28] sm:$0xff]
                %157 = vst [vmem:[%s149 + $0x18] sm:$0xff] %v156
              $region41: #{forward.1} parent=35 // loop_footer
                %s147 = sadd.s32 1, %s143
              $region42: #{forward.1} parent=35 // loop_footer_branch
                %142 = sbr.rel target = $region38
              $region43: #{forward.1} parent=35 // loop_exit
                _
            $region36: #{forward.1} parent=31 // pred_fallthru
              _
            // Predicated region
            $region44: #{forward.1} parent=31 // pred_check
              _
            $region45: #{forward.1} parent=31 // pred_check_branch
              %159 = sbr.rel target = $region47
            $region46: #{forward.1} parent=31 // pred_region
              _
            $region47: #{forward.1} parent=31 // pred_fallthru
              _
          $region32: #{forward.1} parent=27 // pred_fallthru
            _
          %160 = vnop
        $region28: #{forward.1} parent=23 // pred_fallthru
          _
      $region24: #{forward.1} parent=5 // pred_fallthru
        _
      %p161 = scmp.le.s32.totalorder 1, %s9
      %p162 = scmp.lt.s32.totalorder %s9, 3
      %p163 = pnand %p161, %p162
      %p164 = pneg %p163
      // Predicated region
      $region48: #{forward.1} parent=5 // pred_check
        _
      $region49: #{forward.1} parent=5 // pred_check_branch
        %166 = sbr.rel (%p163) target = $region51
      $region50: #{forward.1} parent=5 // pred_region
        %s167 = ssub.s32 %s9, 1
        %s168 = sand.u32 %s22, 1
        %s169 = sand.u32 %s22, 1
        %s170 = smul.addr %s169, 32
        %s171 = scalar_lea.vmem [#allocation2], %s170
        // Predicated region
        $region52: #{forward.1} parent=50 // pred_check
          %p172 = pneg %p35
        $region53: #{forward.1} parent=50 // pred_check_branch
          %174 = sbr.rel (%p172) target = $region55
        $region54: #{forward.1} parent=50 // pred_region
          _
        $region55: #{forward.1} parent=50 // pred_fallthru
          _
        %s175 = sand.u32 %s22, 1
        %s176 = sand.u32 %s22, 1
        %s177 = smul.addr %s176, 32
        %s178 = scalar_lea.vmem [#allocation2], %s177
        %p179 = pneg %p35
        %p180 = pneg %p32
        %p181 = pneg %p56
        %p182 = pneg %p53
        %p183 = pneg %p77
        %p184 = pneg %p74
        %p185 = pneg %p103
        %p186 = pneg %p100
        %p187 = scmp.lt.s32.totalorder %s14, 1
        %s188 = scalar_select %p187, %s14, 1
        %s189 = smul.addr %s188, 4
        %s190 = scalar_lea.vmem %s3, %s189
        %s191 = smul.u32 4, %s14
        %p192 = scmp.lt.s32.totalorder %s14, 1
        %s193 = scalar_select %p192, %s14, 1
        %s194 = smul.addr %s193, 4
        %s195 = scalar_lea.vmem %s3, %s194
        %v197 = vld [vmem:[%s1] sm:$0xf]
        %v198 = vld [vmem:[%s1 + $0x8] sm:$0xf]
        %v199 = vld [vmem:[%s1 + $0x10] sm:$0x3]
        %v200 = vld [vmem:[%s1 + $0x18] sm:$0xf]
        %v201 = vld [vmem:[%s1 + $0x20] sm:$0xf]
        %v202 = vld [vmem:[%s1 + $0x24] sm:$0xf]
        %v203 = vld [vmem:[%s1 + $0x28] sm:$0xf]
        %v204 = vld [vmem:[%s1 + $0x30] sm:$0x3]
        %v205 = vld [vmem:[%s1 + $0x38] sm:$0xf]
        %v206 = vld [vmem:[%s1 + $0x3c] sm:$0xf]
        %v207 = vld [vmem:[%s1 + $0x40] sm:$0xf]
        %v208 = vld [vmem:[%s1 + $0x44] sm:$0xf]
        %v209 = vld [vmem:[%s1 + $0x48] sm:$0xf]
        %v210 = vld [vmem:[%s1 + $0x4c] sm:$0xf]
        %v211 = vld [vmem:[%s1 + $0x50] sm:$0xf]
        %v212 = vld [vmem:[%s1 + $0x54] sm:$0xf]
        %v213 = vld [vmem:[%s1 + $0x58] sm:$0xf]
        %v214 = vld [vmem:[%s1 + $0x5c] sm:$0xf]
        %v215 = vld [vmem:[%s1 + $0x60] sm:$0xf]
        %v216 = vld [vmem:[%s1 + $0x64] sm:$0xf]
        %v217 = vld [vmem:[%s1 + $0x68] sm:$0xf]
        %v218 = vld [vmem:[%s1 + $0x6c] sm:$0xf]
        %v219 = vld [vmem:[%s1 + $0x70] sm:$0xf]
        %v220 = vld [vmem:[%s1 + $0x74] sm:$0xf]
        %v221 = vld [vmem:[%s1 + $0x78] sm:$0xf]
        %v222 = vld [vmem:[%s1 + $0x7c] sm:$0xf]
        %v223 = vld [vmem:[%s1 + $0x80] sm:$0xf]
        %v224 = vld [vmem:[%s1 + $0x84] sm:$0xf]
        %v225 = vld [vmem:[%s1 + $0x88] sm:$0xf]
        %v226 = vld [vmem:[%s1 + $0x8c] sm:$0xf]
        %v227 = vld [vmem:[%s1 + $0x90] sm:$0xf]
        %v228 = vld [vmem:[%s1 + $0x94] sm:$0xf]
        %v229 = vld [vmem:[%s1 + $0x98] sm:$0xf]
        %v230 = vld [vmem:[%s1 + $0x9c] sm:$0xf]
        %v231 = vld [vmem:[%s1 + $0xa0] sm:$0xf]
        %v232 = vld [vmem:[%s1 + $0xa4] sm:$0xf]
        %v233 = vld [vmem:[%s1 + $0xa8] sm:$0xf]
        %v234 = vld [vmem:[%s1 + $0xac] sm:$0xf]
        %v235 = vld [vmem:[%s1 + $0xb0] sm:$0xf]
        %v236 = vld [vmem:[%s1 + $0xb4] sm:$0xf]
        %v237 = vld [vmem:[%s2] sm:$0xff]
        %v238 = vld [vmem:[%s2 + $0x8] sm:$0xff]
        %v239 = vld [vmem:[%s2] sm:$0xf]
        %v240 = vld [vmem:[%s171] sm:$0xff]
        %v241 = vld [vmem:[%s171 + $0x8] sm:$0xff]
        %v242 = vld [vmem:[%s171 + $0x10] sm:$0xff]
        %v243 = vld [vmem:[%s171 + $0x18] sm:$0xff]
        %245 = vset.pattern.permute.xlu0 0
        %246 = vperm.xlu0 %245, %v237
        %v247 = vpop.permute.xlu0 %246
        %v253 = vunpack.c.l.b16 %v240
        %v254 = vunpack.c.h.b16 %v240
        %v255 = vunpack.c.l.b16 %v241
        %v256 = vunpack.c.h.b16 %v241
        %v257 = vunpack.c.l.b16 %v242
        %v258 = vunpack.c.h.b16 %v242
        %v259 = vunpack.c.l.b16 %v243
        %v260 = vunpack.c.h.b16 %v243
        %v261 = vpack.c.b16 %v257, %v253
        %v262 = vpack.c.b16 %v258, %v254
        %v263 = vpack.c.b16 %v259, %v255
        %v264 = vpack.c.b16 %v260, %v256
        %vm269 = vcmask 130048
        %v271 = vsel %vm269, %v197, 0
        %273 = vmatpush.bf16.msra.mxu0 0
        %274 = vmatpush.bf16.msra.mxu0 0
        %275 = vmatpush.bf16.msra.mxu0 0
        %276 = vmatpush.bf16.msra.mxu0 0
        %277 = vmatpush.bf16.msra.mxu0 0
        %278 = vmatpush.bf16.msra.mxu0 0
        %279 = vmatpush.bf16.msra.mxu0 0
        %280 = vmatpush.bf16.msra.mxu0 %v261
        %281 = vmatmul.bf16.gmra.mxu0 %v271
        %v282 = vpop.f32.mrf.mxu0
        %v283 = vadd.f32 %v247, %v282
        %v284 = vpop.f32.mrf.mxu0
        %285 = vdwg.mxu0
        %286 = vmatpush.bf16.msra.mxu0 0
        %287 = vmatpush.bf16.msra.mxu0 0
        %288 = vmatpush.bf16.msra.mxu0 0
        %289 = vmatpush.bf16.msra.mxu0 0
        %290 = vmatpush.bf16.msra.mxu0 0
        %291 = vmatpush.bf16.msra.mxu0 0
        %292 = vmatpush.bf16.msra.mxu0 0
        %293 = vmatpush.bf16.msra.mxu0 %v262
        %294 = vmatmul.bf16.gmra.mxu0 %v271
        %v295 = vpop.f32.mrf.mxu0
        %v296 = vadd.f32 %v247, %v295
        %v297 = vpop.f32.mrf.mxu0
        %298 = vdwg.mxu0
        %299 = vmatpush.bf16.msra.mxu0 0
        %300 = vmatpush.bf16.msra.mxu0 0
        %301 = vmatpush.bf16.msra.mxu0 0
        %302 = vmatpush.bf16.msra.mxu0 0
        %303 = vmatpush.bf16.msra.mxu0 0
        %304 = vmatpush.bf16.msra.mxu0 0
        %305 = vmatpush.bf16.msra.mxu0 0
        %306 = vmatpush.bf16.msra.mxu0 %v263
        %307 = vmatmul.bf16.gmra.mxu0 %v271
        %v308 = vpop.f32.mrf.mxu0
        %v309 = vadd.f32 %v247, %v308
        %v310 = vpop.f32.mrf.mxu0
        %311 = vdwg.mxu0
        %312 = vmatpush.bf16.msra.mxu0 0
        %313 = vmatpush.bf16.msra.mxu0 0
        %314 = vmatpush.bf16.msra.mxu0 0
        %315 = vmatpush.bf16.msra.mxu0 0
        %316 = vmatpush.bf16.msra.mxu0 0
        %317 = vmatpush.bf16.msra.mxu0 0
        %318 = vmatpush.bf16.msra.mxu0 0
        %319 = vmatpush.bf16.msra.mxu0 %v264
        %320 = vmatmul.bf16.gmra.mxu0 %v271
        %v321 = vpop.f32.mrf.mxu0
        %v322 = vadd.f32 %v247, %v321
        %v323 = vpop.f32.mrf.mxu0
        %324 = vdwg.mxu0
        %v325 = vmax.f32 %v283, 0.0
        %v326 = vmax.f32 %v296, 0.0
        %v327 = vmax.f32 %v309, 0.0
        %v328 = vmax.f32 %v322, 0.0
        %v329 = vpack.c.bf16 %v325, %v325
        %v330 = vpack.c.bf16 %v326, %v326
        %v331 = vpack.c.bf16 %v327, %v327
        %v332 = vpack.c.bf16 %v328, %v328
        %333 = vset.pattern.permute.xlu0 1
        %334 = vperm.xlu0 %333, %v237
        %v335 = vpop.permute.xlu0 %334
        %vm337 = vcmask 64512
        %v339 = vsel %vm337, %v198, 0
        %vm341 = vcmask 1043456
        %v343 = vsel %vm341, %v329, 0
        %v346 = vsel %vm341, %v330, 0
        %v349 = vsel %vm341, %v331, 0
        %v352 = vsel %vm341, %v332, 0
        %354 = vmatpush.bf16.msra.mxu0 0
        %355 = vmatpush.bf16.msra.mxu0 0
        %356 = vmatpush.bf16.msra.mxu0 0
        %357 = vmatpush.bf16.msra.mxu0 0
        %358 = vmatpush.bf16.msra.mxu0 0
        %359 = vmatpush.bf16.msra.mxu0 0
        %360 = vmatpush.bf16.msra.mxu0 0
        %361 = vmatpush.bf16.msra.mxu0 %v343
        %362 = vmatmul.bf16.gmra.mxu0 %v339
        %v363 = vpop.f32.mrf.mxu0
        %v364 = vadd.f32 %v335, %v363
        %v365 = vpop.f32.mrf.mxu0
        %366 = vdwg.mxu0
        %367 = vmatpush.bf16.msra.mxu0 0
        %368 = vmatpush.bf16.msra.mxu0 0
        %369 = vmatpush.bf16.msra.mxu0 0
        %370 = vmatpush.bf16.msra.mxu0 0
        %371 = vmatpush.bf16.msra.mxu0 0
        %372 = vmatpush.bf16.msra.mxu0 0
        %373 = vmatpush.bf16.msra.mxu0 0
        %374 = vmatpush.bf16.msra.mxu0 %v346
        %375 = vmatmul.bf16.gmra.mxu0 %v339
        %v376 = vpop.f32.mrf.mxu0
        %v377 = vadd.f32 %v335, %v376
        %v378 = vpop.f32.mrf.mxu0
        %379 = vdwg.mxu0
        %380 = vmatpush.bf16.msra.mxu0 0
        %381 = vmatpush.bf16.msra.mxu0 0
        %382 = vmatpush.bf16.msra.mxu0 0
        %383 = vmatpush.bf16.msra.mxu0 0
        %384 = vmatpush.bf16.msra.mxu0 0
        %385 = vmatpush.bf16.msra.mxu0 0
        %386 = vmatpush.bf16.msra.mxu0 0
        %387 = vmatpush.bf16.msra.mxu0 %v349
        %388 = vmatmul.bf16.gmra.mxu0 %v339
        %v389 = vpop.f32.mrf.mxu0
        %v390 = vadd.f32 %v335, %v389
        %v391 = vpop.f32.mrf.mxu0
        %392 = vdwg.mxu0
        %393 = vmatpush.bf16.msra.mxu0 0
        %394 = vmatpush.bf16.msra.mxu0 0
        %395 = vmatpush.bf16.msra.mxu0 0
        %396 = vmatpush.bf16.msra.mxu0 0
        %397 = vmatpush.bf16.msra.mxu0 0
        %398 = vmatpush.bf16.msra.mxu0 0
        %399 = vmatpush.bf16.msra.mxu0 0
        %400 = vmatpush.bf16.msra.mxu0 %v352
        %401 = vmatmul.bf16.gmra.mxu0 %v339
        %v402 = vpop.f32.mrf.mxu0
        %v403 = vadd.f32 %v335, %v402
        %v404 = vpop.f32.mrf.mxu0
        %405 = vdwg.mxu0
        %v406 = vtanh.pop %v364
        %v407 = vtanh.pop %v377
        %v408 = vtanh.pop %v390
        %v409 = vtanh.pop %v403
        %v410 = vunpack.c.l.bf16 %v240
        %v411 = vunpack.c.h.bf16 %v240
        %v412 = vunpack.c.l.bf16 %v241
        %v413 = vunpack.c.h.bf16 %v241
        %v414 = vunpack.c.l.bf16 %v242
        %v415 = vunpack.c.h.bf16 %v242
        %v416 = vunpack.c.l.bf16 %v243
        %v417 = vunpack.c.h.bf16 %v243
        %v418 = vmul.f32 %v410, %v406
        %v419 = vmul.f32 %v411, %v407
        %v420 = vmul.f32 %v412, %v408
        %v421 = vmul.f32 %v413, %v409
        %v422 = vsub.f32 1.0, %v406
        %v423 = vsub.f32 1.0, %v407
        %v424 = vsub.f32 1.0, %v408
        %v425 = vsub.f32 1.0, %v409
        %v426 = vmul.f32 %v414, %v422
        %v427 = vmul.f32 %v415, %v423
        %v428 = vmul.f32 %v416, %v424
        %v429 = vmul.f32 %v417, %v425
        %v430 = vadd.f32 %v418, %v426
        %v431 = vadd.f32 %v419, %v427
        %v432 = vadd.f32 %v420, %v428
        %v433 = vadd.f32 %v421, %v429
        %v434 = vrot.slane %v432, 4
        %vm435 = vcmask 1047556
        %v436 = vsel %vm435, %v434, %v430
        %v437 = vrot.slane %v430, 4
        %v438 = vsel %vm435, %v432, %v437
        %v440 = vunpack.c.l.s4 1983009808
        %v441 = vunpack.c.0.s8 %v440
        %v442 = vperm.slane %v436, %v441
        %v444 = vunpack.c.l.s4 1983009808
        %v445 = vunpack.c.0.s8 %v444
        %v446 = vperm.slane %v438, %v445
        %v447 = vrot.slane %v433, 4
        %v448 = vsel %vm435, %v447, %v431
        %v449 = vrot.slane %v431, 4
        %v450 = vsel %vm435, %v433, %v449
        %v452 = vunpack.c.l.s4 1983009808
        %v453 = vunpack.c.0.s8 %v452
        %v454 = vperm.slane %v448, %v453
        %v456 = vunpack.c.l.s4 1983009808
        %v457 = vunpack.c.0.s8 %v456
        %v458 = vperm.slane %v450, %v457
        %v459 = vrot.slane %v454, 4
        %v460 = vsel %vm435, %v459, %v442
        %v461 = vrot.slane %v442, 4
        %v462 = vsel %vm435, %v454, %v461
        %v464 = vunpack.c.l.s4 1934713408
        %v465 = vunpack.c.0.s8 %v464
        %v466 = vperm.slane %v460, %v465
        %v468 = vunpack.c.l.s4 1934713408
        %v469 = vunpack.c.0.s8 %v468
        %v470 = vperm.slane %v462, %v469
        %v471 = vrot.slane %v458, 4
        %v472 = vsel %vm435, %v471, %v446
        %v473 = vrot.slane %v446, 4
        %v474 = vsel %vm435, %v458, %v473
        %v476 = vunpack.c.l.s4 1934713408
        %v477 = vunpack.c.0.s8 %v476
        %v478 = vperm.slane %v472, %v477
        %v480 = vunpack.c.l.s4 1934713408
        %v481 = vunpack.c.0.s8 %v480
        %v482 = vperm.slane %v474, %v481
        %v483 = vrot.slane %v466, 4
        %v484 = vsel %vm435, 0.0, %v483
        %v485 = vrot.slane %v470, 4
        %v486 = vsel %vm435, 0.0, %v485
        %v487 = vrot.slane %v478, 4
        %v488 = vsel %vm435, 0.0, %v487
        %v489 = vrot.slane %v482, 4
        %v490 = vsel %vm435, 0.0, %v489
        %v491 = vlaneseq
        %v492 = vand.u32 %v491, 127
        %vm493 = vcmp.lt.s32.totalorder %v492, 49
        %v494 = vsel %vm341, %v466, 0.0
        %495 = vadd.xlane.f32.xlu0 %v494
        %v496 = vpop.xlane.xlu0 %495
        %v497 = vsel %vm341, %v484, 0.0
        %498 = vadd.xlane.f32.xlu0 %v497
        %v499 = vpop.xlane.xlu0 %498
        %v500 = vsel %vm341, %v470, 0.0
        %501 = vadd.xlane.f32.xlu0 %v500
        %v502 = vpop.xlane.xlu0 %501
        %v503 = vsel %vm341, %v486, 0.0
        %504 = vadd.xlane.f32.xlu0 %v503
        %v505 = vpop.xlane.xlu0 %504
        %v506 = vsel %vm341, %v478, 0.0
        %507 = vadd.xlane.f32.xlu0 %v506
        %v508 = vpop.xlane.xlu0 %507
        %v509 = vsel %vm341, %v488, 0.0
        %510 = vadd.xlane.f32.xlu0 %v509
        %v511 = vpop.xlane.xlu0 %510
        %v512 = vsel %vm341, %v482, 0.0
        %513 = vadd.xlane.f32.xlu0 %v512
        %v514 = vpop.xlane.xlu0 %513
        %v515 = vsel %vm341, %v490, 0.0
        %516 = vadd.xlane.f32.xlu0 %v515
        %v517 = vpop.xlane.xlu0 %516
        %v518 = vmul.f32 %v496, 0.020408163
        %v519 = vmul.f32 %v499, 0.020408163
        %v520 = vmul.f32 %v502, 0.020408163
        %v521 = vmul.f32 %v505, 0.020408163
        %v522 = vmul.f32 %v508, 0.020408163
        %v523 = vmul.f32 %v511, 0.020408163
        %v524 = vmul.f32 %v514, 0.020408163
        %v525 = vmul.f32 %v517, 0.020408163
        %v526 = vsel %vm493, %v466, -1e+30
        %v527 = vsel %vm493, %v484, -1e+30
        %v528 = vsel %vm493, %v470, -1e+30
        %v529 = vsel %vm493, %v486, -1e+30
        %v530 = vsel %vm493, %v478, -1e+30
        %v531 = vsel %vm493, %v488, -1e+30
        %v532 = vsel %vm493, %v482, -1e+30
        %v533 = vsel %vm493, %v490, -1e+30
        %v534 = vsel %vm341, %v526, -inf
        %535 = vmax.xlane.f32.xlu0 %v534
        %v536 = vpop.xlane.xlu0 %535
        %v537 = vsel %vm341, %v527, -inf
        %538 = vmax.xlane.f32.xlu0 %v537
        %v539 = vpop.xlane.xlu0 %538
        %v540 = vsel %vm341, %v528, -inf
        %541 = vmax.xlane.f32.xlu0 %v540
        %v542 = vpop.xlane.xlu0 %541
        %v543 = vsel %vm341, %v529, -inf
        %544 = vmax.xlane.f32.xlu0 %v543
        %v545 = vpop.xlane.xlu0 %544
        %v546 = vsel %vm341, %v530, -inf
        %547 = vmax.xlane.f32.xlu0 %v546
        %v548 = vpop.xlane.xlu0 %547
        %v549 = vsel %vm341, %v531, -inf
        %550 = vmax.xlane.f32.xlu0 %v549
        %v551 = vpop.xlane.xlu0 %550
        %v552 = vsel %vm341, %v532, -inf
        %553 = vmax.xlane.f32.xlu0 %v552
        %v554 = vpop.xlane.xlu0 %553
        %v555 = vsel %vm341, %v533, -inf
        %556 = vmax.xlane.f32.xlu0 %v555
        %v557 = vpop.xlane.xlu0 %556
        %v566 = vperm.slane %v518, %v492
        %v567 = vperm.slane %v519, %v492
        %v568 = vperm.slane %v520, %v492
        %v569 = vperm.slane %v521, %v492
        %v570 = vperm.slane %v522, %v492
        %v571 = vperm.slane %v523, %v492
        %v572 = vperm.slane %v524, %v492
        %v573 = vperm.slane %v525, %v492
        %vm574 = vcmask 1041409
        %v575 = vsel %vm574, %v567, %v566
        %vm576 = vcmask 1042434
        %v577 = vsel %vm576, %v568, %v575
        %vm578 = vcmask 1043459
        %v579 = vsel %vm578, %v569, %v577
        %vm580 = vcmask 1044484
        %v581 = vsel %vm580, %v570, %v579
        %vm582 = vcmask 1045509
        %v583 = vsel %vm582, %v571, %v581
        %vm584 = vcmask 1046534
        %v585 = vsel %vm584, %v572, %v583
        %vm586 = vcmask 1047559
        %v587 = vsel %vm586, %v573, %v585
        %v597 = vadd.s32 %v492, 4294967292
        %v598 = vperm.slane %v536, %v597
        %v599 = vperm.slane %v539, %v597
        %v600 = vperm.slane %v542, %v597
        %v601 = vperm.slane %v545, %v597
        %v602 = vperm.slane %v548, %v597
        %v603 = vperm.slane %v551, %v597
        %v604 = vperm.slane %v554, %v597
        %v605 = vperm.slane %v557, %v597
        %v606 = vsel %vm574, %v599, %v598
        %v607 = vsel %vm576, %v600, %v606
        %v608 = vsel %vm578, %v601, %v607
        %v609 = vsel %vm580, %v602, %v608
        %v610 = vsel %vm582, %v603, %v609
        %v611 = vsel %vm584, %v604, %v610
        %v612 = vsel %vm586, %v605, %v611
        %vm614 = vcmask 31744
        %v615 = vsel %vm614, %v587, %v612
        %v616 = vpack.c.bf16 %v615, %v615
        %v618 = vsel %vm337, %v199, 0
        %v621 = vsel %vm341, %v616, 0
        %623 = vmatpush.bf16.msra.mxu0 0
        %624 = vmatpush.bf16.msra.mxu0 0
        %625 = vmatpush.bf16.msra.mxu0 0
        %626 = vmatpush.bf16.msra.mxu0 0
        %627 = vmatpush.bf16.msra.mxu0 0
        %628 = vmatpush.bf16.msra.mxu0 0
        %629 = vmatpush.bf16.msra.mxu0 0
        %630 = vmatpush.bf16.msra.mxu0 %v621
        %631 = vmatmul.bf16.gmra.mxu0 %v618
        %v632 = vpop.f32.mrf.mxu0
        %v633 = vadd.f32 0.0, %v632
        %v634 = vpop.f32.mrf.mxu0
        %635 = vdwg.mxu0
        %v636 = vmax.f32 %v633, 0.0
        %v637 = vpack.c.bf16 %v636, %v636
        %v639 = vsel %vm614, %v200, 0
        %vm641 = vcmask 1041408
        %v643 = vsel %vm641, %v637, 0
        %645 = vmatpush.bf16.msra.mxu0 0
        %646 = vmatpush.bf16.msra.mxu0 0
        %647 = vmatpush.bf16.msra.mxu0 0
        %648 = vmatpush.bf16.msra.mxu0 0
        %649 = vmatpush.bf16.msra.mxu0 0
        %650 = vmatpush.bf16.msra.mxu0 0
        %651 = vmatpush.bf16.msra.mxu0 0
        %652 = vmatpush.bf16.msra.mxu0 %v643
        %653 = vmatmul.bf16.gmra.mxu0 %v639
        %v654 = vpop.f32.mrf.mxu0
        %v655 = vadd.f32 0.0, %v654
        %v656 = vpop.f32.mrf.mxu0
        %657 = vdwg.mxu0
        %659 = vrot.lane.b32.xlu0 %v655, 124
        %v660 = vpop.permute.xlu0 %659
        %v662 = vadd.f32 %v655, %v660
        %v663 = vxor.u32 %v662, 2147483648
        %v664 = vmul.f32 %v663, 1.442695
        %v665 = vpow.pop %v664
        %v666 = vadd.f32 %v665, 1.0
        %v667 = vrcp.pop %v666
        %v668 = vmul.f32 %v666, %v667
        %v669 = vsub.f32 1.0, %v668
        %v670 = vmul.f32 %v667, %v669
        %v671 = vadd.f32 %v667, %v670
        %vm672 = vweird.f32 %v666
        %vm673 = vweird.f32 %v667
        %vm674 = vmor %vm672, %vm673
        %v675 = vsel %vm674, %v667, %v671
        %v676 = vand.u32 2147483647, %v666
        %vm677 = vcmp.eq.f32.partialorder %v676, 8.507059e+37
        %v678 = vand.u32 %v666, 2147483648
        %v679 = vor.u32 1.1754944e-38, %v678
        %v680 = vsel %vm677, %v679, %v675
        %v681 = vmul.f32 1.0, %v680
        %v682 = vperm.slane %v681, 0
        %v683 = vlaneseq
        %v684 = vshrl.u32 %v683, 7
        %686 = vset.pattern.permute.xlu0 %v684
        %687 = vperm.xlu0 %686, %v682
        %v688 = vpop.permute.xlu0 %687
        %v689 = vperm.slane %v681, 1
        %v690 = vlaneseq
        %v691 = vshrl.u32 %v690, 7
        %693 = vset.pattern.permute.xlu0 %v691
        %694 = vperm.xlu0 %693, %v689
        %v695 = vpop.permute.xlu0 %694
        %v696 = vperm.slane %v681, 2
        %v697 = vlaneseq
        %v698 = vshrl.u32 %v697, 7
        %700 = vset.pattern.permute.xlu0 %v698
        %701 = vperm.xlu0 %700, %v696
        %v702 = vpop.permute.xlu0 %701
        %v703 = vperm.slane %v681, 3
        %v704 = vlaneseq
        %v705 = vshrl.u32 %v704, 7
        %707 = vset.pattern.permute.xlu0 %v705
        %708 = vperm.xlu0 %707, %v703
        %v709 = vpop.permute.xlu0 %708
        %v710 = vperm.slane %v681, 4
        %v711 = vlaneseq
        %v712 = vshrl.u32 %v711, 7
        %714 = vset.pattern.permute.xlu0 %v712
        %715 = vperm.xlu0 %714, %v710
        %v716 = vpop.permute.xlu0 %715
        %v717 = vperm.slane %v681, 5
        %v718 = vlaneseq
        %v719 = vshrl.u32 %v718, 7
        %721 = vset.pattern.permute.xlu0 %v719
        %722 = vperm.xlu0 %721, %v717
        %v723 = vpop.permute.xlu0 %722
        %v724 = vperm.slane %v681, 6
        %v725 = vlaneseq
        %v726 = vshrl.u32 %v725, 7
        %728 = vset.pattern.permute.xlu0 %v726
        %729 = vperm.xlu0 %728, %v724
        %v730 = vpop.permute.xlu0 %729
        %v731 = vperm.slane %v681, 7
        %v732 = vlaneseq
        %v733 = vshrl.u32 %v732, 7
        %735 = vset.pattern.permute.xlu0 %v733
        %736 = vperm.xlu0 %735, %v731
        %v737 = vpop.permute.xlu0 %736
        %v738 = vmul.f32 %v466, %v688
        %v739 = vmul.f32 %v484, %v695
        %v740 = vmul.f32 %v470, %v702
        %v741 = vmul.f32 %v486, %v709
        %v742 = vmul.f32 %v478, %v716
        %v743 = vmul.f32 %v488, %v723
        %v744 = vmul.f32 %v482, %v730
        %v745 = vmul.f32 %v490, %v737
        %v746 = vsel %vm341, %v738, 0.0
        %v747 = vsel %vm341, %v739, 0.0
        %v748 = vadd.f32 %v746, %v747
        %v749 = vsel %vm341, %v740, 0.0
        %v750 = vadd.f32 %v748, %v749
        %v751 = vsel %vm341, %v741, 0.0
        %v752 = vadd.f32 %v750, %v751
        %v753 = vsel %vm341, %v742, 0.0
        %v754 = vadd.f32 %v752, %v753
        %v755 = vsel %vm341, %v743, 0.0
        %v756 = vadd.f32 %v754, %v755
        %v757 = vsel %vm341, %v744, 0.0
        %v758 = vadd.f32 %v756, %v757
        %v759 = vsel %vm341, %v745, 0.0
        %v760 = vadd.f32 %v758, %v759
        %v761 = vrcp.pop 8.0
        %v762 = vmul.f32 8.0, %v761
        %v763 = vsub.f32 1.0, %v762
        %v764 = vmul.f32 %v761, %v763
        %v765 = vadd.f32 %v761, %v764
        %vm766 = vweird.f32 %v761
        %v767 = vsel %vm766, %v761, %v765
        %v768 = vmul.f32 %v760, %v767
        %v769 = vsel %vm341, %v738, -inf
        %v770 = vsel %vm341, %v739, -inf
        %v771 = vsel %vm341, %v740, -inf
        %v772 = vsel %vm341, %v741, -inf
        %v773 = vsel %vm341, %v742, -inf
        %v774 = vmax.f32 %v769, %v773
        %v775 = vsel %vm341, %v743, -inf
        %v776 = vmax.f32 %v770, %v775
        %v777 = vsel %vm341, %v744, -inf
        %v778 = vmax.f32 %v771, %v777
        %v779 = vsel %vm341, %v745, -inf
        %v780 = vmax.f32 %v772, %v779
        %v781 = vmax.f32 %v774, %v776
        %v782 = vmax.f32 %v778, %v780
        %v783 = vmax.f32 %v781, %v782
        %v784 = vpack.c.bf16 %v768, %v768
        %v785 = vpack.c.bf16 %v783, %v783
        %v818 = vunpack.c.l.b16 %v205
        %v819 = vunpack.c.l.b16 %v206
        %v820 = vunpack.c.l.b16 %v207
        %v821 = vunpack.c.l.b16 %v208
        %v822 = vunpack.c.l.b16 %v209
        %v823 = vunpack.c.l.b16 %v210
        %v824 = vunpack.c.l.b16 %v211
        %v825 = vunpack.c.l.b16 %v212
        %v826 = vunpack.c.l.b16 %v213
        %v827 = vunpack.c.l.b16 %v214
        %v828 = vunpack.c.l.b16 %v215
        %v829 = vunpack.c.l.b16 %v216
        %v830 = vunpack.c.l.b16 %v217
        %v831 = vunpack.c.l.b16 %v218
        %v832 = vunpack.c.l.b16 %v219
        %v833 = vunpack.c.l.b16 %v220
        %v834 = vunpack.c.l.b16 %v221
        %v835 = vunpack.c.l.b16 %v222
        %v836 = vunpack.c.l.b16 %v223
        %v837 = vunpack.c.l.b16 %v224
        %v838 = vunpack.c.l.b16 %v225
        %v839 = vunpack.c.l.b16 %v226
        %v840 = vunpack.c.l.b16 %v227
        %v841 = vunpack.c.l.b16 %v228
        %v842 = vunpack.c.l.b16 %v229
        %v843 = vunpack.c.l.b16 %v230
        %v844 = vunpack.c.l.b16 %v231
        %v845 = vunpack.c.l.b16 %v232
        %v846 = vunpack.c.l.b16 %v233
        %v847 = vunpack.c.l.b16 %v234
        %v848 = vunpack.c.l.b16 %v235
        %v849 = vunpack.c.l.b16 %v236
        %v850 = vpack.c.b16 %v819, %v818
        %v851 = vpack.c.b16 %v821, %v820
        %v852 = vpack.c.b16 %v823, %v822
        %v853 = vpack.c.b16 %v825, %v824
        %v854 = vpack.c.b16 %v827, %v826
        %v855 = vpack.c.b16 %v829, %v828
        %v856 = vpack.c.b16 %v831, %v830
        %v857 = vpack.c.b16 %v833, %v832
        %v858 = vpack.c.b16 %v835, %v834
        %v859 = vpack.c.b16 %v837, %v836
        %v860 = vpack.c.b16 %v839, %v838
        %v861 = vpack.c.b16 %v841, %v840
        %v862 = vpack.c.b16 %v843, %v842
        %v863 = vpack.c.b16 %v845, %v844
        %v864 = vpack.c.b16 %v847, %v846
        %v865 = vpack.c.b16 %v849, %v848
        %882 = vmatpush.bf16.msra.mxu0 %v857
        %883 = vmatpush.bf16.msra.mxu0 %v856
        %884 = vmatpush.bf16.msra.mxu0 %v855
        %885 = vmatpush.bf16.msra.mxu0 %v854
        %886 = vmatpush.bf16.msra.mxu0 %v853
        %887 = vmatpush.bf16.msra.mxu0 %v852
        %888 = vmatpush.bf16.msra.mxu0 %v851
        %889 = vmatpush.bf16.msra.mxu0 %v850
        %890 = vmatmul.bf16.gmra.mxu0 %v784
        %v891 = vpop.f32.mrf.mxu0
        %v892 = vadd.f32 0.0, %v891
        %v893 = vpop.f32.mrf.mxu0
        %894 = vdwg.mxu0
        %895 = vmatpush.bf16.msra.mxu0 %v865
        %896 = vmatpush.bf16.msra.mxu0 %v864
        %897 = vmatpush.bf16.msra.mxu0 %v863
        %898 = vmatpush.bf16.msra.mxu0 %v862
        %899 = vmatpush.bf16.msra.mxu0 %v861
        %900 = vmatpush.bf16.msra.mxu0 %v860
        %901 = vmatpush.bf16.msra.mxu0 %v859
        %902 = vmatpush.bf16.msra.mxu0 %v858
        %903 = vmatmul.bf16.gmra.mxu0 %v785
        %v904 = vpop.f32.mrf.mxu0
        %v905 = vadd.f32 %v892, %v904
        %v906 = vpop.f32.mrf.mxu0
        %907 = vdwg.mxu0
        %v908 = vxor.u32 %v905, 2147483648
        %v909 = vmul.f32 %v908, 1.442695
        %v910 = vpow.pop %v909
        %v911 = vadd.f32 %v910, 1.0
        %v912 = vrcp.pop %v911
        %v913 = vmul.f32 %v911, %v912
        %v914 = vsub.f32 1.0, %v913
        %v915 = vmul.f32 %v912, %v914
        %v916 = vadd.f32 %v912, %v915
        %vm917 = vweird.f32 %v911
        %vm918 = vweird.f32 %v912
        %vm919 = vmor %vm917, %vm918
        %v920 = vsel %vm919, %v912, %v916
        %v921 = vand.u32 2147483647, %v911
        %vm922 = vcmp.eq.f32.partialorder %v921, 8.507059e+37
        %v923 = vand.u32 %v911, 2147483648
        %v924 = vor.u32 1.1754944e-38, %v923
        %v925 = vsel %vm922, %v924, %v920
        %v926 = vmul.f32 1.0, %v925
        %v927 = vmul.f32 %v738, %v926
        %v928 = vmul.f32 %v739, %v926
        %v929 = vmul.f32 %v740, %v926
        %v930 = vmul.f32 %v741, %v926
        %v931 = vmul.f32 %v742, %v926
        %v932 = vmul.f32 %v743, %v926
        %v933 = vmul.f32 %v744, %v926
        %v934 = vmul.f32 %v745, %v926
        %v935 = vsel %vm493, %v927, -1e+30
        %v936 = vsel %vm493, %v928, -1e+30
        %v937 = vsel %vm493, %v929, -1e+30
        %v938 = vsel %vm493, %v930, -1e+30
        %v939 = vsel %vm493, %v931, -1e+30
        %v940 = vsel %vm493, %v932, -1e+30
        %v941 = vsel %vm493, %v933, -1e+30
        %v942 = vsel %vm493, %v934, -1e+30
        %v943 = vsel %vm341, %v935, -inf
        %944 = vmax.xlane.f32.xlu0 %v943
        %v945 = vpop.xlane.xlu0 %944
        %v946 = vsel %vm341, %v936, -inf
        %947 = vmax.xlane.f32.xlu0 %v946
        %v948 = vpop.xlane.xlu0 %947
        %v949 = vsel %vm341, %v937, -inf
        %950 = vmax.xlane.f32.xlu0 %v949
        %v951 = vpop.xlane.xlu0 %950
        %v952 = vsel %vm341, %v938, -inf
        %953 = vmax.xlane.f32.xlu0 %v952
        %v954 = vpop.xlane.xlu0 %953
        %v955 = vsel %vm341, %v939, -inf
        %956 = vmax.xlane.f32.xlu0 %v955
        %v957 = vpop.xlane.xlu0 %956
        %v958 = vsel %vm341, %v940, -inf
        %959 = vmax.xlane.f32.xlu0 %v958
        %v960 = vpop.xlane.xlu0 %959
        %v961 = vsel %vm341, %v941, -inf
        %962 = vmax.xlane.f32.xlu0 %v961
        %v963 = vpop.xlane.xlu0 %962
        %v964 = vsel %vm341, %v942, -inf
        %965 = vmax.xlane.f32.xlu0 %v964
        %v966 = vpop.xlane.xlu0 %965
        %v967 = vpack.c.bf16 %v945, %v945
        %v968 = vpack.c.bf16 %v948, %v948
        %v969 = vpack.c.bf16 %v951, %v951
        %v970 = vpack.c.bf16 %v954, %v954
        %v971 = vpack.c.bf16 %v957, %v957
        %v972 = vpack.c.bf16 %v960, %v960
        %v973 = vpack.c.bf16 %v963, %v963
        %v974 = vpack.c.bf16 %v966, %v966
        %975 = vset.pattern.permute.xlu0 2
        %976 = vperm.xlu0 %975, %v237
        %v977 = vpop.permute.xlu0 %976
        %980 = vset.pattern.permute.xlu0 2
        %981 = vperm.xlu0 %980, %v238
        %v982 = vpop.permute.xlu0 %981
        %v986 = vunpack.c.l.b16 %v201
        %v987 = vunpack.c.l.b16 %v202
        %v988 = vpack.c.b16 %v987, %v986
        %v997 = vunpack.c.l.b16 %v967
        %v998 = vunpack.c.l.b16 %v968
        %v999 = vunpack.c.l.b16 %v969
        %v1000 = vunpack.c.l.b16 %v970
        %v1001 = vunpack.c.l.b16 %v971
        %v1002 = vunpack.c.l.b16 %v972
        %v1003 = vunpack.c.l.b16 %v973
        %v1004 = vunpack.c.l.b16 %v974
        %v1005 = vperm.slane %v997, %v492
        %v1006 = vperm.slane %v998, %v492
        %v1007 = vperm.slane %v999, %v492
        %v1008 = vperm.slane %v1000, %v492
        %v1009 = vperm.slane %v1001, %v492
        %v1010 = vperm.slane %v1002, %v492
        %v1011 = vperm.slane %v1003, %v492
        %v1012 = vperm.slane %v1004, %v492
        %v1013 = vsel %vm574, %v1006, %v1005
        %v1014 = vsel %vm576, %v1007, %v1013
        %v1015 = vsel %vm578, %v1008, %v1014
        %v1016 = vsel %vm580, %v1009, %v1015
        %v1017 = vsel %vm582, %v1010, %v1016
        %v1018 = vsel %vm584, %v1011, %v1017
        %v1019 = vsel %vm586, %v1012, %v1018
        %v1020 = vpack.c.b16 %v1019, %v1019
        %v1022 = vsel %vm337, %v988, 0
        %v1025 = vsel %vm341, %v1020, 0
        %1027 = vmatpush.bf16.msra.mxu0 0
        %1028 = vmatpush.bf16.msra.mxu0 0
        %1029 = vmatpush.bf16.msra.mxu0 0
        %1030 = vmatpush.bf16.msra.mxu0 0
        %1031 = vmatpush.bf16.msra.mxu0 0
        %1032 = vmatpush.bf16.msra.mxu0 0
        %1033 = vmatpush.bf16.msra.mxu0 0
        %1034 = vmatpush.bf16.msra.mxu0 %v1025
        %1035 = vmatmul.bf16.gmra.mxu0 %v1022
        %v1036 = vpop.f32.mrf.mxu0
        %v1037 = vadd.f32 %v977, %v1036
        %v1038 = vpop.f32.mrf.mxu0
        %v1039 = vadd.f32 %v982, %v1038
        %1040 = vdwg.mxu0
        %v1041 = vmax.f32 %v1037, 0.0
        %v1042 = vmax.f32 %v1039, 0.0
        %v1043 = vpack.c.bf16 %v1042, %v1041
        %1044 = vset.pattern.permute.xlu0 3
        %1045 = vperm.xlu0 %1044, %v237
        %v1046 = vpop.permute.xlu0 %1045
        %v1049 = vsel %vm269, %v203, 0
        %1051 = vmatpush.bf16.msra.mxu0 0
        %1052 = vmatpush.bf16.msra.mxu0 0
        %1053 = vmatpush.bf16.msra.mxu0 0
        %1054 = vmatpush.bf16.msra.mxu0 0
        %1055 = vmatpush.bf16.msra.mxu0 0
        %1056 = vmatpush.bf16.msra.mxu0 0
        %1057 = vmatpush.bf16.msra.mxu0 0
        %1058 = vmatpush.bf16.msra.mxu0 %v1043
        %1059 = vmatmul.bf16.gmra.mxu0 %v1049
        %v1060 = vpop.f32.mrf.mxu0
        %v1061 = vadd.f32 %v1046, %v1060
        %v1062 = vpop.f32.mrf.mxu0
        %1063 = vdwg.mxu0
        %v1065 = vperm.slane %v1061, 0
        %v1066 = vlaneseq
        %v1067 = vshrl.u32 %v1066, 7
        %1069 = vset.pattern.permute.xlu0 %v1067
        %1070 = vperm.xlu0 %1069, %v1065
        %v1071 = vpop.permute.xlu0 %1070
        %v1072 = vperm.slane %v1061, 1
        %v1073 = vlaneseq
        %v1074 = vshrl.u32 %v1073, 7
        %1076 = vset.pattern.permute.xlu0 %v1074
        %1077 = vperm.xlu0 %1076, %v1072
        %v1078 = vpop.permute.xlu0 %1077
        %v1079 = vperm.slane %v1061, 2
        %v1080 = vlaneseq
        %v1081 = vshrl.u32 %v1080, 7
        %1083 = vset.pattern.permute.xlu0 %v1081
        %1084 = vperm.xlu0 %1083, %v1079
        %v1085 = vpop.permute.xlu0 %1084
        %v1086 = vperm.slane %v1061, 3
        %v1087 = vlaneseq
        %v1088 = vshrl.u32 %v1087, 7
        %1090 = vset.pattern.permute.xlu0 %v1088
        %1091 = vperm.xlu0 %1090, %v1086
        %v1092 = vpop.permute.xlu0 %1091
        %v1093 = vperm.slane %v1061, 4
        %v1094 = vlaneseq
        %v1095 = vshrl.u32 %v1094, 7
        %1097 = vset.pattern.permute.xlu0 %v1095
        %1098 = vperm.xlu0 %1097, %v1093
        %v1099 = vpop.permute.xlu0 %1098
        %v1100 = vperm.slane %v1061, 5
        %v1101 = vlaneseq
        %v1102 = vshrl.u32 %v1101, 7
        %1104 = vset.pattern.permute.xlu0 %v1102
        %1105 = vperm.xlu0 %1104, %v1100
        %v1106 = vpop.permute.xlu0 %1105
        %v1107 = vperm.slane %v1061, 6
        %v1108 = vlaneseq
        %v1109 = vshrl.u32 %v1108, 7
        %1111 = vset.pattern.permute.xlu0 %v1109
        %1112 = vperm.xlu0 %1111, %v1107
        %v1113 = vpop.permute.xlu0 %1112
        %v1114 = vperm.slane %v1061, 7
        %v1115 = vlaneseq
        %v1116 = vshrl.u32 %v1115, 7
        %1118 = vset.pattern.permute.xlu0 %v1116
        %1119 = vperm.xlu0 %1118, %v1114
        %v1120 = vpop.permute.xlu0 %1119
        %v1129 = vadd.f32 %v945, %v1071
        %v1130 = vadd.f32 %v948, %v1078
        %v1131 = vadd.f32 %v951, %v1085
        %v1132 = vadd.f32 %v954, %v1092
        %v1133 = vadd.f32 %v957, %v1099
        %v1134 = vadd.f32 %v960, %v1106
        %v1135 = vadd.f32 %v963, %v1113
        %v1136 = vadd.f32 %v966, %v1120
        %v1137 = vmax.f32 %v1129, 0.0
        %v1138 = vmax.f32 %v1130, 0.0
        %v1139 = vmax.f32 %v1131, 0.0
        %v1140 = vmax.f32 %v1132, 0.0
        %v1141 = vmax.f32 %v1133, 0.0
        %v1142 = vmax.f32 %v1134, 0.0
        %v1143 = vmax.f32 %v1135, 0.0
        %v1144 = vmax.f32 %v1136, 0.0
        %v1145 = vpack.c.bf16 %v1137, %v1137
        %v1146 = vpack.c.bf16 %v1138, %v1138
        %v1147 = vpack.c.bf16 %v1139, %v1139
        %v1148 = vpack.c.bf16 %v1140, %v1140
        %v1149 = vpack.c.bf16 %v1141, %v1141
        %v1150 = vpack.c.bf16 %v1142, %v1142
        %v1151 = vpack.c.bf16 %v1143, %v1143
        %v1152 = vpack.c.bf16 %v1144, %v1144
        %1154 = vset.pattern.permute.xlu0 4
        %1155 = vperm.xlu0 %1154, %v239
        %v1156 = vpop.permute.xlu0 %1155
        %v1166 = vunpack.c.l.b16 %v1145
        %v1167 = vunpack.c.l.b16 %v1146
        %v1168 = vunpack.c.l.b16 %v1147
        %v1169 = vunpack.c.l.b16 %v1148
        %v1170 = vunpack.c.l.b16 %v1149
        %v1171 = vunpack.c.l.b16 %v1150
        %v1172 = vunpack.c.l.b16 %v1151
        %v1173 = vunpack.c.l.b16 %v1152
        %1174 = vset.pattern.permute.xlu0 0
        %1175 = vperm.xlu0 %1174, %v1166
        %v1176 = vpop.permute.xlu0 %1175
        %1177 = vset.pattern.permute.xlu0 0
        %1178 = vperm.xlu0 %1177, %v1167
        %v1179 = vpop.permute.xlu0 %1178
        %1180 = vset.pattern.permute.xlu0 0
        %1181 = vperm.xlu0 %1180, %v1168
        %v1182 = vpop.permute.xlu0 %1181
        %1183 = vset.pattern.permute.xlu0 0
        %1184 = vperm.xlu0 %1183, %v1169
        %v1185 = vpop.permute.xlu0 %1184
        %1186 = vset.pattern.permute.xlu0 0
        %1187 = vperm.xlu0 %1186, %v1170
        %v1188 = vpop.permute.xlu0 %1187
        %1189 = vset.pattern.permute.xlu0 0
        %1190 = vperm.xlu0 %1189, %v1171
        %v1191 = vpop.permute.xlu0 %1190
        %1192 = vset.pattern.permute.xlu0 0
        %1193 = vperm.xlu0 %1192, %v1172
        %v1194 = vpop.permute.xlu0 %1193
        %1195 = vset.pattern.permute.xlu0 0
        %1196 = vperm.xlu0 %1195, %v1173
        %v1197 = vpop.permute.xlu0 %1196
        %v1198 = vperm.slane %v1176, %v492
        %v1199 = vperm.slane %v1179, %v492
        %v1200 = vperm.slane %v1182, %v492
        %v1201 = vperm.slane %v1185, %v492
        %v1202 = vperm.slane %v1188, %v492
        %v1203 = vperm.slane %v1191, %v492
        %v1204 = vperm.slane %v1194, %v492
        %v1205 = vperm.slane %v1197, %v492
        %v1206 = vsel %vm574, %v1199, %v1198
        %v1207 = vsel %vm576, %v1200, %v1206
        %v1208 = vsel %vm578, %v1201, %v1207
        %v1209 = vsel %vm580, %v1202, %v1208
        %v1210 = vsel %vm582, %v1203, %v1209
        %v1211 = vsel %vm584, %v1204, %v1210
        %v1212 = vsel %vm586, %v1205, %v1211
        %v1213 = vpack.c.b16 %v1212, %v1212
        %v1215 = vsel %vm337, %v204, 0
        %v1218 = vsel %vm341, %v1213, 0
        %1220 = vmatpush.bf16.msra.mxu0 0
        %1221 = vmatpush.bf16.msra.mxu0 0
        %1222 = vmatpush.bf16.msra.mxu0 0
        %1223 = vmatpush.bf16.msra.mxu0 0
        %1224 = vmatpush.bf16.msra.mxu0 0
        %1225 = vmatpush.bf16.msra.mxu0 0
        %1226 = vmatpush.bf16.msra.mxu0 0
        %1227 = vmatpush.bf16.msra.mxu0 %v1218
        %1228 = vmatmul.bf16.gmra.mxu0 %v1215
        %v1229 = vpop.f32.mrf.mxu0
        %v1230 = vadd.f32 %v1156, %v1229
        %v1231 = vpop.f32.mrf.mxu0
        %1232 = vdwg.mxu0
        %v1233 = vsel %vm614, %v1230, 0.0
        %1234 = vst [vmem:[%s195] sm:$0xf] %v1233
        %p1235 = scmp.lt.s32.totalorder %s14, 1
        %s1236 = scalar_select %p1235, %s14, 1
        %s1237 = smul.addr %s1236, 4
        %s1238 = scalar_lea.vmem %s3, %s1237
        // Predicated region
        $region56: #{forward.1} parent=50 // pred_check
          %p1239 = pneg %p100
        $region57: #{forward.1} parent=50 // pred_check_branch
          %1241 = sbr.rel (%p1239) target = $region59
        $region58: #{forward.1} parent=50 // pred_region
          _
        $region59: #{forward.1} parent=50 // pred_fallthru
          _
      $region51: #{forward.1} parent=5 // pred_fallthru
        _
      %p1242 = scmp.le.s32.totalorder 2, %s9
      // Predicated region
      $region60: #{forward.1} parent=5 // pred_check
        %p1243 = pneg %p1242
      $region61: #{forward.1} parent=5 // pred_check_branch
        %1245 = sbr.rel (%p1243) target = $region63
      $region62: #{forward.1} parent=5 // pred_region
        %s1246 = ssub.s32 %s9, 2
        // Predicated region
        $region64: #{forward.1} parent=62 // pred_check
          %p1247 = pneg %p106
        $region65: #{forward.1} parent=62 // pred_check_branch
          %1249 = sbr.rel (%p1247) target = $region67
        $region66: #{forward.1} parent=62 // pred_region
          %p1250 = scmp.lt.s32.totalorder %s15, 1
          %s1251 = scalar_select %p1250, %s15, 1
          %s1252 = smul.addr %s1251, 4
          %s1253 = scalar_lea.vmem %s3, %s1252
        $region67: #{forward.1} parent=62 // pred_fallthru
          _
      $region63: #{forward.1} parent=5 // pred_fallthru
        _
    $region6: #{forward.1} parent=1 // loop_footer
      %s13 = sadd.s32 1, %s9
    $region7: #{forward.1} parent=1 // loop_footer_branch
      %8 = sbr.rel target = $region3
    $region8: #{forward.1} parent=1 // loop_exit
      _

</llo_original>
